<compile_context>
chip_gen: v5e
topology: v5e:2x2
jax: 0.10.0
libtpu: 0.0.40
codegen_flags: <defaults>
</compile_context>

<pallas_src>
import functools

import jax
import jax.numpy as jnp
from jax.experimental import pallas as pl
from jax.experimental.pallas import tpu as pltpu


def _hflip_kernel(idx_ref, act_ref, x_ref, perm_ref, o_ref, *,
                  n_chunks, chunk, cdt):
    # idx_ref:  SMEM int32[N]  compacted image indices (flipped first, padded)
    # act_ref:  SMEM int32[N]  1 for real (flipped) steps, 0 for padding
    # x_ref:    VMEM (1, tR, W) input block (aliased with the output)
    # perm_ref: VMEM (chunk, chunk) anti-diagonal permutation, grid-resident
    # o_ref:    VMEM (1, tR, W) output block
    i = pl.program_id(0)
    r = pl.program_id(1)
    active = act_ref[i] != 0

    @pl.when(active)
    def _flip():
        # Reverse W chunk-by-chunk: input chunk j lands at output chunk
        # (n_chunks-1-j); within a chunk an exact 0/1 anti-diagonal matmul
        # reverses the 128 lanes.  MXU cost is `chunk` MACs/element (vs. W
        # for a full-width permutation).  Static unroll (n_chunks is small).
        # TODO(synk): switch the intra-chunk reverse to an XLU lane-reverse
        # (lax.rev) once Mosaic guarantees that lowering; exact for all int
        # dtypes and zero MXU (matters most for f32 on v5e).
        for j in range(n_chunks):
            src = x_ref[0, :, pl.ds(j * chunk, chunk)].astype(cdt)
            rev = jnp.dot(src, perm_ref[...],
                          preferred_element_type=jnp.float32)
            dst = (n_chunks - 1 - j) * chunk
            o_ref[0, :, pl.ds(dst, chunk)] = rev.astype(o_ref.dtype)

    # Only reachable when NO image is flipped (n_flip == 0): the single frozen
    # output block must hold valid bytes before the final writeback.
    @pl.when(jnp.logical_and(jnp.logical_not(active),
                             jnp.logical_and(i == 0, r == 0)))
    def _copy():
        o_ref[...] = x_ref[...]


def _pick_row_tile(R, W, itemsize, max_block_bytes):
    """Largest row tile that divides R, respects sublane packing, fits budget."""
    min_sub = {1: 32, 2: 16, 4: 8, 8: 8}.get(itemsize, 8)
    cands = [t for t in range(min_sub, R + 1, min_sub)
             if R % t == 0 and t * W * itemsize <= max_block_bytes]
    if cands:
        return max(cands)
    if R % min_sub == 0:
        return min_sub              # very wide rows: smallest legal row tile
    # TODO(synk): ragged row tiles (pl.BoundedSlice) for R not a multiple of
    # the sublane packing; until then fall back to one block per image.
    return R


def _vmem_limit_bytes(need):
    try:
        phys = int(pltpu.get_tpu_info().vmem_capacity_bytes)
    except Exception:
        phys = 64 << 20                       # v7x-conservative fallback
    cap = max(phys - (12 << 20), 24 << 20)    # leave compiler headroom
    return int(min(max(need, 32 << 20), cap))


def random_hflip_with_pose(image, flip_flag=None, p=0.5, key=None,
                           max_block_bytes=4 << 20):
    """JAX/Pallas port of RandomHorizontalFlipWithPose.forward.

    image: (N, C, H, W).  flip_flag: optional bool (N,).  If None, flags are
    drawn as uniform(N) < p (the module's get_flip_flag); `key` defaults to
    PRNGKey(0), which makes the "random" flips deterministic unless a fresh
    key is passed.

    NOTE: the kernel aliases `image` with its output so images that are NOT
    flipped never touch HBM.  For that saving to be real, call under jax.jit
    with `image` donated (jax.jit(random_hflip_with_pose, donate_argnums=0));
    otherwise XLA inserts a defensive copy (results stay correct).
    """
    N, C, H, W = image.shape
    if flip_flag is None:
        if key is None:
            key = jax.random.PRNGKey(0)  # deterministic unless a key is passed
        flip_flag = jax.random.uniform(key, (N,)) < p
    flip_flag = jnp.asarray(flip_flag).reshape(N).astype(jnp.bool_)
    assert flip_flag.shape[0] == N

    R = C * H
    image2d = image.reshape(N, R, W)
    itemsize = int(jnp.dtype(image.dtype).itemsize)

    # ---- compacted, padded schedule (traced ops; the grid itself is static) ----
    n_flip = jnp.sum(flip_flag.astype(jnp.int32))
    order = jnp.argsort(jnp.logical_not(flip_flag), stable=True).astype(jnp.int32)
    steps = jnp.arange(N, dtype=jnp.int32)
    active = (steps < n_flip).astype(jnp.int32)
    last = jnp.where(n_flip > 0, order[jnp.maximum(n_flip - 1, 0)], 0).astype(jnp.int32)
    flip_idx = jnp.where(active == 1, order, last)

    # ---- tiling ----
    tR = _pick_row_tile(R, W, itemsize, max_block_bytes)
    nR = R // tR
    chunk = 128 if (W % 128 == 0) else W      # lane-dense chunks; full-W fallback
    n_chunks = W // chunk
    # TODO(synk): pad W to a multiple of 128 (lane-dense stores) for odd widths,
    # and pack several tiny images per block when C*H*W is overhead-dominated.

    # Exact 0/1 anti-diagonal chunk permutation: bf16 for bf16 images (native
    # MXU path), f32 otherwise (exact for f32 and for integers < 2^24).
    cdt = jnp.bfloat16 if image.dtype == jnp.bfloat16 else jnp.float32
    perm = jnp.eye(chunk, dtype=cdt)[::-1]

    blk_bytes = tR * W * itemsize
    perm_bytes = chunk * chunk * int(jnp.dtype(cdt).itemsize)
    vmem_need = (4 * blk_bytes          # in + out, double-buffered
                 + 2 * perm_bytes       # resident permutation
                 + 4 * tR * chunk * 4   # per-chunk f32 temporaries
                 + (2 << 20))           # slack
    vmem_limit = _vmem_limit_bytes(vmem_need)

    kernel = functools.partial(_hflip_kernel, n_chunks=n_chunks, chunk=chunk,
                               cdt=cdt)

    def img_map(i, r, idx, act):
        # Active steps walk (image, row-tile) normally; padded steps freeze at
        # the last active step's block so they issue no DMA and no writeback.
        # Input and output share this map (same block index per step), which
        # keeps the read-before-write ordering required by the aliasing.
        a = act[i]
        rr = a * r + (1 - a) * (nR - 1)
        return (idx[i], rr, 0)

    out2d = pl.pallas_call(
        kernel,
        out_shape=jax.ShapeDtypeStruct((N, R, W), image.dtype),
        grid_spec=pltpu.PrefetchScalarGridSpec(
            num_scalar_prefetch=2,
            grid=(N, nR),
            in_specs=[
                pl.BlockSpec((1, tR, W), img_map),
                pl.BlockSpec((chunk, chunk), lambda i, r, idx, act: (0, 0)),
            ],
            out_specs=pl.BlockSpec((1, tR, W), img_map),
        ),
        # Alias the image (operand 2, after the two scalar-prefetch operands)
        # with the output: un-flipped images keep their original bytes without
        # the kernel ever reading or writing them.
        input_output_aliases={2: 0},
        compiler_params=pltpu.CompilerParams(
            dimension_semantics=("arbitrary", "arbitrary"),
            vmem_limit_bytes=vmem_limit,
        ),
        cost_estimate=pl.CostEstimate(
            flops=2 * N * R * W * chunk,
            transcendentals=0,
            bytes_accessed=2 * N * R * W * itemsize,
        ),
    )(flip_idx, active, image2d, perm)

    return out2d.reshape(N, C, H, W)


if __name__ == "__main__":
    key = jax.random.PRNGKey(0)
    k1, k2, k3 = jax.random.split(key, 3)

    def reference(img, flags):
        return jnp.where(flags[:, None, None, None], img[..., ::-1], img)

    # Case 1: small image, W < 128 (single-chunk fallback path).
    img_a = jax.random.normal(k1, (2, 4, 16, 16), dtype=jnp.float32)
    for flags in (jnp.array([True, False]),
                  jnp.array([False, False]),
                  jnp.array([True, True])):
        out = jax.block_until_ready(random_hflip_with_pose(img_a, flags))
        assert out.shape == img_a.shape and out.dtype == img_a.dtype
        assert jnp.array_equal(out, reference(img_a, flags)), flags

    # Case 2: W multiple of 128 (chunked lane-tile reverse) + forced row
    # tiling (tR < C*H) to exercise the frozen-index padding path.
    img_b = jax.random.normal(k2, (2, 2, 16, 256), dtype=jnp.float32)
    for flags in (jnp.array([True, False]), jnp.array([False, True])):
        out = jax.block_until_ready(
            random_hflip_with_pose(img_b, flags, max_block_bytes=8 * 256 * 4))
        assert jnp.array_equal(out, reference(img_b, flags)), flags

    # Case 3: bf16 images take the bf16 MXU path (still exact: 0/1 perm).
    img_c = jax.random.normal(k3, (2, 1, 8, 256), dtype=jnp.bfloat16)
    out = jax.block_until_ready(
        random_hflip_with_pose(img_c, jnp.array([True, True])))
    assert out.dtype == jnp.bfloat16
    assert jnp.array_equal(out, reference(img_c, jnp.array([True, True])))

    # Case 4: flip_flag=None (module's get_flip_flag: uniform(N) < p).
    out = jax.block_until_ready(random_hflip_with_pose(img_a, None, p=0.5, key=k2))
    assert out.shape == img_a.shape

    # Case 5: intended production path — jit with the image donated so the
    # input/output aliasing is real (no defensive copy by XLA).
    flip_jit = jax.jit(random_hflip_with_pose, donate_argnums=0)
    flags = jnp.array([True, False])
    out = jax.block_until_ready(flip_jit(img_a + 0.0, flags))
    assert jnp.array_equal(out, reference(img_a, flags))

    print("KERNEL_OK")
</pallas_src>

<mosaic_0001>
module attributes {stable_mosaic.version = 11 : i64} {
  func.func @_hflip_kernel(%arg0: i32, %arg1: i32, %arg2: memref<2xi32, #tpu.memory_space<smem>>, %arg3: memref<2xi32, #tpu.memory_space<smem>>, %arg4: memref<1x64x16xf32, #tpu.memory_space<vmem>>, %arg5: memref<16x16xf32, #tpu.memory_space<vmem>>, %arg6: memref<1x64x16xf32, #tpu.memory_space<vmem>>) attributes {dimension_semantics = [#tpu.dimension_semantics<arbitrary>, #tpu.dimension_semantics<arbitrary>], iteration_bounds = array<i64: 2, 1>, scalar_prefetch = 2 : i64, scratch_operands = 0 : i64, tpu.core_type = #tpu.core_type<tc>, window_params = [{transform_indices = @transform_0, window_bounds = array<i64: 1, 64, 16>}, {pipeline_mode = #tpu.pipeline_mode<synchronous>, transform_indices = @transform_1, window_bounds = array<i64: 16, 16>}, {transform_indices = @transform_2, window_bounds = array<i64: 1, 64, 16>}]} {
    %0 = arith.index_cast %arg0 : i32 to index
    %1 = memref.load %arg3[%0] : memref<2xi32, #tpu.memory_space<smem>>
    %c0_i32 = arith.constant 0 : i32
    %2 = arith.cmpi ne, %1, %c0_i32 : i32
    %3 = arith.extui %2 : i1 to i32
    %c0_i32_0 = arith.constant 0 : i32
    %4 = arith.cmpi ne, %3, %c0_i32_0 : i32
    scf.if %4 {
      %c0 = arith.constant 0 : index
      %c0_4 = arith.constant 0 : index
      %c0_5 = arith.constant 0 : index
      %12 = vector.load %arg4[%c0, %c0_4, %c0_5] : memref<1x64x16xf32, #tpu.memory_space<vmem>>, vector<1x64x16xf32>
      %13 = vector.shape_cast %12 : vector<1x64x16xf32> to vector<64x16xf32>
      %c0_6 = arith.constant 0 : index
      %c0_7 = arith.constant 0 : index
      %14 = vector.load %arg5[%c0_6, %c0_7] : memref<16x16xf32, #tpu.memory_space<vmem>>, vector<16x16xf32>
      %cst = arith.constant dense<0.000000e+00> : vector<64x16xf32>
      %15 = tpu.matmul %13, %14, %cst {dimension_numbers = #tpu.dot_dimension_numbers<[1], [0], [0], [1], [0, 0, 1, 1], [], []>} : vector<64x16xf32>, vector<16x16xf32>, vector<64x16xf32> -> vector<64x16xf32>
      %c0_8 = arith.constant 0 : index
      %c0_9 = arith.constant 0 : index
      %c0_10 = arith.constant 0 : index
      %16 = vector.load %arg6[%c0_8, %c0_9, %c0_10] : memref<1x64x16xf32, #tpu.memory_space<vmem>>, vector<1x64x16xf32>
      %17 = vector.shape_cast %16 : vector<1x64x16xf32> to vector<64x16xf32>
      %18 = vector.shape_cast %15 : vector<64x16xf32> to vector<1x64x16xf32>
      tpu.vector_store %arg6[%c0_8, %c0_9, %c0_10], %18 {strides = array<i32>} : memref<1x64x16xf32, #tpu.memory_space<vmem>>, vector<1x64x16xf32>,
    } else {
    }
    %true = arith.constant true
    %5 = arith.xori %2, %true : i1
    %c0_i32_1 = arith.constant 0 : i32
    %6 = arith.cmpi eq, %arg0, %c0_i32_1 : i32
    %c0_i32_2 = arith.constant 0 : i32
    %7 = arith.cmpi eq, %arg1, %c0_i32_2 : i32
    %8 = arith.andi %6, %7 : i1
    %9 = arith.andi %5, %8 : i1
    %10 = arith.extui %9 : i1 to i32
    %c0_i32_3 = arith.constant 0 : i32
    %11 = arith.cmpi ne, %10, %c0_i32_3 : i32
    scf.if %11 {
      %c0 = arith.constant 0 : index
      %c0_4 = arith.constant 0 : index
      %c0_5 = arith.constant 0 : index
      %12 = vector.load %arg4[%c0, %c0_4, %c0_5] : memref<1x64x16xf32, #tpu.memory_space<vmem>>, vector<1x64x16xf32>
      %c0_6 = arith.constant 0 : index
      %c0_7 = arith.constant 0 : index
      %c0_8 = arith.constant 0 : index
      %13 = vector.load %arg6[%c0_6, %c0_7, %c0_8] : memref<1x64x16xf32, #tpu.memory_space<vmem>>, vector<1x64x16xf32>
      tpu.vector_store %arg6[%c0_6, %c0_7, %c0_8], %12 {strides = array<i32>} : memref<1x64x16xf32, #tpu.memory_space<vmem>>, vector<1x64x16xf32>,
    } else {
    }
    return
  }
  func.func @transform_0(%arg0: i32, %arg1: i32, %arg2: memref<2xi32, #tpu.memory_space<smem>>, %arg3: memref<2xi32, #tpu.memory_space<smem>>) -> (i32, i32, i32) {
    %0 = arith.index_cast %arg0 : i32 to index
    %1 = memref.load %arg3[%0] : memref<2xi32, #tpu.memory_space<smem>>
    %2 = arith.muli %1, %arg1 : i32
    %c1_i32 = arith.constant 1 : i32
    %3 = arith.subi %c1_i32, %1 : i32
    %c0_i32 = arith.constant 0 : i32
    %4 = arith.muli %3, %c0_i32 : i32
    %5 = arith.addi %2, %4 : i32
    %6 = arith.index_cast %arg0 : i32 to index
    %7 = memref.load %arg2[%6] : memref<2xi32, #tpu.memory_space<smem>>
    %c0_i32_0 = arith.constant 0 : i32
    %c0_i32_1 = arith.constant 0 : i32
    return %7, %5, %c0_i32_0 : i32, i32, i32
  }
  func.func @transform_1(%arg0: i32, %arg1: i32, %arg2: memref<2xi32, #tpu.memory_space<smem>>, %arg3: memref<2xi32, #tpu.memory_space<smem>>) -> (i32, i32) {
    %c0_i32 = arith.constant 0 : i32
    %c0_i32_0 = arith.constant 0 : i32
    %c0_i32_1 = arith.constant 0 : i32
    return %c0_i32, %c0_i32_0 : i32, i32
  }
  func.func @transform_2(%arg0: i32, %arg1: i32, %arg2: memref<2xi32, #tpu.memory_space<smem>>, %arg3: memref<2xi32, #tpu.memory_space<smem>>) -> (i32, i32, i32) {
    %0 = arith.index_cast %arg0 : i32 to index
    %1 = memref.load %arg3[%0] : memref<2xi32, #tpu.memory_space<smem>>
    %2 = arith.muli %1, %arg1 : i32
    %c1_i32 = arith.constant 1 : i32
    %3 = arith.subi %c1_i32, %1 : i32
    %c0_i32 = arith.constant 0 : i32
    %4 = arith.muli %3, %c0_i32 : i32
    %5 = arith.addi %2, %4 : i32
    %6 = arith.index_cast %arg0 : i32 to index
    %7 = memref.load %arg2[%6] : memref<2xi32, #tpu.memory_space<smem>>
    %c0_i32_0 = arith.constant 0 : i32
    %c0_i32_1 = arith.constant 0 : i32
    return %7, %5, %c0_i32_0 : i32, i32, i32
  }
}

</mosaic_0001>

<llo_original>
// kernel: tpu_custom_call.1
$region0: #{tpu_custom_call.1}
  #allocation0 [shape = 'u32[]', space=smem, size = 0x4, offset = 0x4, fixed_abs, tag = 'smem constant byte address 0x4 - core index']
  #allocation1 [shape = 'u32[72,128]{1,0:T(1,128)}', space=vmem, size = 0x9000, scoped, tag = 'internal scratch']
  #allocation2 [shape = 's32[1]{0}', space=sflag, size = 0x4, scoped, tag = 'scoped memory for tpu_custom_call.1']
  #allocation3 [shape = 'u8[512]{0}', space=smem, size = 0x200, scoped, tag = 'prefetched SMEM operand 0']
  #allocation4 [shape = 'u8[512]{0}', space=smem, size = 0x200, scoped, tag = 'prefetched SMEM operand 1']
  %s0 = inlined_call_operand.vmem [shape: s32[2], index: 0, kind: input, shape index: {}]
  %s1 = inlined_call_operand.vmem [shape: s32[2], index: 1, kind: input, shape index: {}]
  %s2 = inlined_call_operand.vmem [shape: f32[2,64,16], index: 2, kind: input, shape index: {}, may-alias: {2,4}]
  %s3 = inlined_call_operand.vmem [shape: f32[16,16], index: 3, kind: input, shape index: {}]
  %s4 = inlined_call_operand.vmem [shape: f32[2,64,16], index: 4, kind: output, shape index: {}, may-alias: {2,4}]
  %s5 = sld [smem:[#allocation0]]
  $region49: #{tpu_custom_call.1} parent=0
    _
  %s7 = ssub.s32 1, %s5
  %s8 = scalar_select 0, %s7, %s5
  %s10 = sshll.u32 %s0, 4
  %s11 = int_to_ptr.vmem [resolvable:$true] %s10
  %13 = dma.vmem_to_smem %s11, 16, [#allocation3], [#allocation2]
  %s15 = sshll.u32 %s1, 4
  %s16 = int_to_ptr.vmem [resolvable:$true] %s15
  %18 = dma.vmem_to_smem %s16, 16, [#allocation4], [#allocation2]
  %20 = dma.done [#allocation2], 32
  %21 = sfence
  loop: start=0, step=1, limit=4
  $region2: #{tpu_custom_call.1} parent=0 // loop_pre_header
    _
  $region3: #{tpu_custom_call.1} parent=0 // loop_header
    %s23 = sphi 0, %s27
    %p24 = scmp.ge.s32.totalorder %s23, 4
    %s30 = sphi 0, %s42
    %s31 = sphi 0, %s38
    %s32 = sphi 0, %s30
    %s33 = sphi 0, %s31
    %s34 = sphi 0, %s32
    %s35 = sphi 0, %s33
    %s53 = sphi 0, %s55
    %s56 = sphi 0, %s53
    %s57 = sphi 0, %s56
    %s73 = sphi 0, %s57
    %s77 = sphi 0, %s77
    %s79 = sphi 0, %s77
    %s80 = sphi 0, %s79
    %s94 = sphi 0, %s80
    %s108 = sphi 0, %s110
    %s111 = sphi 0, %s108
    %s112 = sphi 0, %s111
    %s128 = sphi 0, %s112
  $region4: #{tpu_custom_call.1} parent=0 // loop_header_branch
    %26 = sbr.rel (%p24) target = $region8
  $region5: #{tpu_custom_call.1} parent=0 // loop_body
    %s28 = ssub.s32 %s23, 1
    %s29 = ssub.s32 %s23, 2
    %s36 = sadd.s32 1, %s31
    %p37 = scmp.ge.s32.totalorder %s36, 1
    %s38 = scalar_select %p37, 0, %s36
    %s39 = sadd.s32 1, %s30
    %s40 = scalar_select %p37, %s39, %s30
    %p41 = scmp.ge.s32.totalorder %s40, 2
    %s42 = scalar_select %p41, 0, %s40
    %s43 = sld [smem:[#allocation4 + %s30]]
    %s44 = smul.u32 %s43, %s31
    %s45 = sld [smem:[#allocation3 + %s30]]
    %s46 = sld [smem:[#allocation4 + %s42]]
    %s47 = smul.u32 %s46, %s38
    %s48 = sld [smem:[#allocation3 + %s42]]
    %s49 = ssub.s32 %s45, %s48
    %s50 = ssub.s32 %s44, %s47
    %s51 = sor.u32 %s49, %s50
    %p52 = scmp.eq.s32.totalorder %s51, 0
    %s54 = sadd.s32 %s53, 1
    %s55 = scalar_select %p52, %s53, %s54
    %p58 = pneg %p52
    %p59 = scmp.eq.s32.totalorder %s23, 1
    %p60 = por %p58, %p59
    %p61 = scmp.ne.s32.totalorder %s53, %s56
    %p62 = scmp.eq.s32.totalorder %s23, 0
    %p63 = por %p61, %p62
    %p64 = scmp.ne.s32.totalorder %s53, %s56
    %p65 = scmp.eq.s32.totalorder %s28, 1
    %p66 = por %p64, %p65
    %p67 = scmp.ne.s32.totalorder %s56, %s57
    %p68 = scmp.eq.s32.totalorder %s28, 0
    %p69 = por %p67, %p68
    %p70 = scmp.ne.s32.totalorder %s56, %s57
    %p71 = scmp.eq.s32.totalorder %s29, 1
    %p72 = por %p70, %p71
    %p74 = scmp.ne.s32.totalorder %s57, %s73
    %p75 = scmp.eq.s32.totalorder %s29, 0
    %p76 = por %p74, %p75
    %s78 = sadd.s32 %s77, 1
    %p81 = scmp.eq.s32.totalorder %s23, 1
    %p82 = scmp.ne.s32.totalorder %s77, %s79
    %p83 = scmp.eq.s32.totalorder %s23, 0
    %p84 = por %p82, %p83
    %p85 = scmp.ne.s32.totalorder %s77, %s79
    %p86 = scmp.eq.s32.totalorder %s28, 1
    %p87 = por %p85, %p86
    %p88 = scmp.ne.s32.totalorder %s79, %s80
    %p89 = scmp.eq.s32.totalorder %s28, 0
    %p90 = por %p88, %p89
    %p91 = scmp.ne.s32.totalorder %s79, %s80
    %p92 = scmp.eq.s32.totalorder %s29, 1
    %p93 = por %p91, %p92
    %p95 = scmp.ne.s32.totalorder %s80, %s94
    %p96 = scmp.eq.s32.totalorder %s29, 0
    %p97 = por %p95, %p96
    %s98 = sld [smem:[#allocation4 + %s30]]
    %s99 = smul.u32 %s98, %s31
    %s100 = sld [smem:[#allocation3 + %s30]]
    %s101 = sld [smem:[#allocation4 + %s42]]
    %s102 = smul.u32 %s101, %s38
    %s103 = sld [smem:[#allocation3 + %s42]]
    %s104 = ssub.s32 %s100, %s103
    %s105 = ssub.s32 %s99, %s102
    %s106 = sor.u32 %s104, %s105
    %p107 = scmp.eq.s32.totalorder %s106, 0
    %s109 = sadd.s32 %s108, 1
    %s110 = scalar_select %p107, %s108, %s109
    %p113 = pneg %p107
    %p114 = scmp.eq.s32.totalorder %s23, 1
    %p115 = por %p113, %p114
    %p116 = scmp.ne.s32.totalorder %s108, %s111
    %p117 = scmp.eq.s32.totalorder %s23, 0
    %p118 = por %p116, %p117
    %p119 = scmp.ne.s32.totalorder %s108, %s111
    %p120 = scmp.eq.s32.totalorder %s28, 1
    %p121 = por %p119, %p120
    %p122 = scmp.ne.s32.totalorder %s111, %s112
    %p123 = scmp.eq.s32.totalorder %s28, 0
    %p124 = por %p122, %p123
    %p125 = scmp.ne.s32.totalorder %s111, %s112
    %p126 = scmp.eq.s32.totalorder %s29, 1
    %p127 = por %p125, %p126
    %p129 = scmp.ne.s32.totalorder %s112, %s128
    %p130 = scmp.eq.s32.totalorder %s29, 0
    %p131 = por %p129, %p130
    %p132 = scmp.le.s32.totalorder 1, %s23
    %p133 = scmp.lt.s32.totalorder %s23, 3
    %p134 = pnand %p132, %p133
    %p135 = pneg %p134
    // Predicated region
    $region9: #{tpu_custom_call.1} parent=5 // pred_check
      _
    $region10: #{tpu_custom_call.1} parent=5 // pred_check_branch
      %137 = sbr.rel (%p134) target = $region12
    $region11: #{tpu_custom_call.1} parent=5 // pred_region
      %s138 = ssub.s32 %s23, 1
      // Predicated region
      $region13: #{tpu_custom_call.1} parent=11 // pred_check
        %p139 = pneg %p90
      $region14: #{tpu_custom_call.1} parent=11 // pred_check_branch
        %141 = sbr.rel (%p139) target = $region16
      $region15: #{tpu_custom_call.1} parent=11 // pred_region
        _
      $region16: #{tpu_custom_call.1} parent=11 // pred_fallthru
        _
    $region12: #{tpu_custom_call.1} parent=5 // pred_fallthru
      _
    %p142 = scmp.lt.s32.totalorder %s23, 2
    // Predicated region
    $region17: #{tpu_custom_call.1} parent=5 // pred_check
      %p143 = pneg %p142
    $region18: #{tpu_custom_call.1} parent=5 // pred_check_branch
      %145 = sbr.rel (%p143) target = $region20
    $region19: #{tpu_custom_call.1} parent=5 // pred_region
      // Predicated region
      $region21: #{tpu_custom_call.1} parent=19 // pred_check
        %p146 = pneg %p63
      $region22: #{tpu_custom_call.1} parent=19 // pred_check_branch
        %148 = sbr.rel (%p146) target = $region24
      $region23: #{tpu_custom_call.1} parent=19 // pred_region
        %s149 = sld [smem:[#allocation4 + %s30]]
        %s150 = smul.u32 %s149, %s31
        %s151 = sld [smem:[#allocation3 + %s30]]
        %s152 = smul.u32 8, %s150
        %p153 = scmp.lt.s32.totalorder %s151, 1
        %s154 = scalar_select %p153, %s151, 1
        %p155 = scmp.lt.s32.totalorder %s152, 7
        %s156 = scalar_select %p155, %s152, 7
        %s157 = smul.addr %s154, 8
        %s158 = sadd.s32 %s156, %s157
        %s159 = smul.addr %s158, 8
        %s160 = scalar_lea.vmem %s2, %s159
        %s161 = sld [smem:[#allocation4 + %s30]]
        %s162 = smul.u32 %s161, %s31
        %s163 = sld [smem:[#allocation3 + %s30]]
        %s164 = smul.u32 8, %s162
      $region24: #{tpu_custom_call.1} parent=19 // pred_fallthru
        _
    $region20: #{tpu_custom_call.1} parent=5 // pred_fallthru
      _
    %p165 = scmp.le.s32.totalorder 1, %s23
    %p166 = scmp.lt.s32.totalorder %s23, 3
    %p167 = pnand %p165, %p166
    %p168 = pneg %p167
    // Predicated region
    $region25: #{tpu_custom_call.1} parent=5 // pred_check
      _
    $region26: #{tpu_custom_call.1} parent=5 // pred_check_branch
      %170 = sbr.rel (%p167) target = $region28
    $region27: #{tpu_custom_call.1} parent=5 // pred_region
      %s171 = ssub.s32 %s23, 1
      %s172 = sld [smem:[#allocation4 + %s32]]
      %s173 = smul.u32 %s172, %s33
      %s174 = sld [smem:[#allocation3 + %s32]]
      %s175 = smul.u32 8, %s173
      %p176 = scmp.lt.s32.totalorder %s174, 1
      %s177 = scalar_select %p176, %s174, 1
      %p178 = scmp.lt.s32.totalorder %s175, 7
      %s179 = scalar_select %p178, %s175, 7
      %s180 = smul.addr %s177, 8
      %s181 = sadd.s32 %s179, %s180
      %s182 = smul.addr %s181, 8
      %s183 = scalar_lea.vmem %s2, %s182
      %p184 = pneg %p69
      %p185 = pneg %p66
      %p186 = pneg %p90
      %p187 = pneg %p87
      %p188 = pneg %p124
      %p189 = pneg %p121
      %s190 = sld [smem:[#allocation4 + %s32]]
      %s191 = smul.u32 %s190, %s33
      %s192 = sld [smem:[#allocation3 + %s32]]
      %s193 = smul.u32 8, %s191
      %p194 = scmp.lt.s32.totalorder %s192, 1
      %s195 = scalar_select %p194, %s192, 1
      %p196 = scmp.lt.s32.totalorder %s193, 7
      %s197 = scalar_select %p196, %s193, 7
      %s198 = smul.addr %s195, 8
      %s199 = sadd.s32 %s197, %s198
      %s200 = smul.addr %s199, 8
      %s201 = scalar_lea.vmem %s4, %s200
      %s202 = sld [smem:[#allocation4 + %s32]]
      %s203 = smul.u32 %s202, %s33
      %s204 = sld [smem:[#allocation3 + %s32]]
      %s205 = smul.u32 8, %s203
      %p206 = scmp.lt.s32.totalorder %s204, 1
      %s207 = scalar_select %p206, %s204, 1
      %p208 = scmp.lt.s32.totalorder %s205, 7
      %s209 = scalar_select %p208, %s205, 7
      %s210 = smul.addr %s207, 8
      %s211 = sadd.s32 %s209, %s210
      %s212 = smul.addr %s211, 8
      %s213 = scalar_lea.vmem %s2, %s212
      %s214 = sld [smem:[#allocation4 + %s32]]
      %s215 = smul.u32 %s214, %s33
      %s216 = sld [smem:[#allocation3 + %s32]]
      %s217 = smul.u32 8, %s215
      %s218 = sld [smem:[#allocation4 + %s32]]
      %s219 = smul.u32 %s218, %s33
      %s220 = sld [smem:[#allocation3 + %s32]]
      %s221 = smul.u32 8, %s219
      %p222 = scmp.lt.s32.totalorder %s220, 1
      %s223 = scalar_select %p222, %s220, 1
      %p224 = scmp.lt.s32.totalorder %s221, 7
      %s225 = scalar_select %p224, %s221, 7
      %s226 = smul.addr %s223, 8
      %s227 = sadd.s32 %s225, %s226
      %s228 = smul.addr %s227, 8
      %s229 = scalar_lea.vmem %s4, %s228
      %s230 = sld [smem:[#allocation4 + %s32]]
      %s231 = smul.u32 %s230, %s33
      %s232 = sld [smem:[#allocation3 + %s32]]
      %s233 = smul.u32 8, %s231
      %s234 = sld [smem:[#allocation4 + %s32]]
      %p235 = scmp.ne.s32.totalorder %s234, 0
      // Predicated region
      $region29: #{tpu_custom_call.1} parent=27 // pred_check
        %p236 = pneg %p235
      $region30: #{tpu_custom_call.1} parent=27 // pred_check_branch
        %238 = sbr.rel (%p236) target = $region32
      $region31: #{tpu_custom_call.1} parent=27 // pred_region
        %v239 = vld [vmem:[%s213] sm:$0xff]
        %v240 = vld [vmem:[%s213 + $0x8] sm:$0xff]
        %v241 = vld [vmem:[%s213 + $0x10] sm:$0xff]
        %v242 = vld [vmem:[%s213 + $0x18] sm:$0xff]
        %v243 = vld [vmem:[%s213 + $0x20] sm:$0xff]
        %v244 = vld [vmem:[%s213 + $0x28] sm:$0xff]
        %v245 = vld [vmem:[%s213 + $0x30] sm:$0xff]
        %v246 = vld [vmem:[%s213 + $0x38] sm:$0xff]
        %v247 = vld [vmem:[%s3] sm:$0xff]
        %v248 = vld [vmem:[%s3 + $0x8] sm:$0xff]
        %vm249 = vcmask 130048
        %v251 = vsel %vm249, %v239, 0
        %v254 = vsel %vm249, %v240, 0
        %v257 = vsel %vm249, %v241, 0
        %v260 = vsel %vm249, %v242, 0
        %v263 = vsel %vm249, %v243, 0
        %v266 = vsel %vm249, %v244, 0
        %v269 = vsel %vm249, %v245, 0
        %v272 = vsel %vm249, %v246, 0
        %274 = vmatpush.msra.mxu0 0.0
        %275 = vmatpush.msra.mxu0 0.0
        %276 = vmatpush.msra.mxu0 0.0
        %277 = vmatpush.msra.mxu0 0.0
        %278 = vmatpush.msra.mxu0 0.0
        %279 = vmatpush.msra.mxu0 0.0
        %280 = vmatpush.msra.mxu0 0.0
        %281 = vmatpush.msra.mxu0 0.0
        %282 = vmatpush.msra.mxu0 0.0
        %283 = vmatpush.msra.mxu0 0.0
        %284 = vmatpush.msra.mxu0 0.0
        %285 = vmatpush.msra.mxu0 0.0
        %286 = vmatpush.msra.mxu0 0.0
        %287 = vmatpush.msra.mxu0 0.0
        %288 = vmatpush.msra.mxu0 %v248
        %289 = vmatpush.msra.mxu0 %v247
        %290 = vmatmul.f32.gmra.mxu0 %v251
        %v291 = vpop.f32.mrf.mxu0
        %v292 = vadd.f32 0.0, %v291
        %293 = vmatmul.f32.gmra.mxu0 %v254
        %v294 = vpop.f32.mrf.mxu0
        %v295 = vadd.f32 0.0, %v294
        %296 = vmatmul.f32.gmra.mxu0 %v257
        %v297 = vpop.f32.mrf.mxu0
        %v298 = vadd.f32 0.0, %v297
        %299 = vmatmul.f32.gmra.mxu0 %v260
        %v300 = vpop.f32.mrf.mxu0
        %v301 = vadd.f32 0.0, %v300
        %302 = vmatmul.f32.gmra.mxu0 %v263
        %v303 = vpop.f32.mrf.mxu0
        %v304 = vadd.f32 0.0, %v303
        %305 = vmatmul.f32.gmra.mxu0 %v266
        %v306 = vpop.f32.mrf.mxu0
        %v307 = vadd.f32 0.0, %v306
        %308 = vmatmul.f32.gmra.mxu0 %v269
        %v309 = vpop.f32.mrf.mxu0
        %v310 = vadd.f32 0.0, %v309
        %311 = vmatmul.f32.gmra.mxu0 %v272
        %v312 = vpop.f32.mrf.mxu0
        %v313 = vadd.f32 0.0, %v312
        %314 = vdwg.mxu0
        %315 = vst.msk [vmem:[%s229] sm:$0xff] %vm249, %v292
        %316 = vst.msk [vmem:[%s229 + $0x8] sm:$0xff] %vm249, %v295
        %317 = vst.msk [vmem:[%s229 + $0x10] sm:$0xff] %vm249, %v298
        %318 = vst.msk [vmem:[%s229 + $0x18] sm:$0xff] %vm249, %v301
        %319 = vst.msk [vmem:[%s229 + $0x20] sm:$0xff] %vm249, %v304
        %320 = vst.msk [vmem:[%s229 + $0x28] sm:$0xff] %vm249, %v307
        %321 = vst.msk [vmem:[%s229 + $0x30] sm:$0xff] %vm249, %v310
        %322 = vst.msk [vmem:[%s229 + $0x38] sm:$0xff] %vm249, %v313
      $region32: #{tpu_custom_call.1} parent=27 // pred_fallthru
        _
      %p323 = scmp.eq.s32.totalorder %s234, 0
      %p324 = scmp.eq.s32.totalorder %s32, 0
      %p325 = scmp.eq.s32.totalorder %s33, 0
      %p326 = pnand %p324, %p325
      %p327 = pneg %p326
      %p328 = pnand %p323, %p327
      %p329 = pneg %p328
      // Predicated region
      $region33: #{tpu_custom_call.1} parent=27 // pred_check
        _
      $region34: #{tpu_custom_call.1} parent=27 // pred_check_branch
        %331 = sbr.rel (%p328) target = $region36
      $region35: #{tpu_custom_call.1} parent=27 // pred_region
        %v332 = vld [vmem:[%s213] sm:$0xff]
        %v333 = vld [vmem:[%s213 + $0x8] sm:$0xff]
        %v334 = vld [vmem:[%s213 + $0x10] sm:$0xff]
        %v335 = vld [vmem:[%s213 + $0x18] sm:$0xff]
        %v336 = vld [vmem:[%s213 + $0x20] sm:$0xff]
        %v337 = vld [vmem:[%s213 + $0x28] sm:$0xff]
        %v338 = vld [vmem:[%s213 + $0x30] sm:$0xff]
        %v339 = vld [vmem:[%s213 + $0x38] sm:$0xff]
        %vm340 = vcmask 130048
        %341 = vst.msk [vmem:[%s229] sm:$0xff] %vm340, %v332
        %342 = vst.msk [vmem:[%s229 + $0x8] sm:$0xff] %vm340, %v333
        %343 = vst.msk [vmem:[%s229 + $0x10] sm:$0xff] %vm340, %v334
        %344 = vst.msk [vmem:[%s229 + $0x18] sm:$0xff] %vm340, %v335
        %345 = vst.msk [vmem:[%s229 + $0x20] sm:$0xff] %vm340, %v336
        %346 = vst.msk [vmem:[%s229 + $0x28] sm:$0xff] %vm340, %v337
        %347 = vst.msk [vmem:[%s229 + $0x30] sm:$0xff] %vm340, %v338
        %348 = vst.msk [vmem:[%s229 + $0x38] sm:$0xff] %vm340, %v339
      $region36: #{tpu_custom_call.1} parent=27 // pred_fallthru
        _
      %s349 = sld [smem:[#allocation4 + %s32]]
      %s350 = smul.u32 %s349, %s33
      %s351 = sld [smem:[#allocation3 + %s32]]
      %s352 = smul.u32 8, %s350
      %p353 = scmp.lt.s32.totalorder %s351, 1
      %s354 = scalar_select %p353, %s351, 1
      %p355 = scmp.lt.s32.totalorder %s352, 7
      %s356 = scalar_select %p355, %s352, 7
      %s357 = smul.addr %s354, 8
      %s358 = sadd.s32 %s356, %s357
      %s359 = smul.addr %s358, 8
      %s360 = scalar_lea.vmem %s4, %s359
      // Predicated region
      $region37: #{tpu_custom_call.1} parent=27 // pred_check
        %p361 = pneg %p121
      $region38: #{tpu_custom_call.1} parent=27 // pred_check_branch
        %363 = sbr.rel (%p361) target = $region40
      $region39: #{tpu_custom_call.1} parent=27 // pred_region
        %s364 = sld [smem:[#allocation4 + %s32]]
        %s365 = smul.u32 %s364, %s33
        %s366 = sld [smem:[#allocation3 + %s32]]
        %s367 = smul.u32 8, %s365
      $region40: #{tpu_custom_call.1} parent=27 // pred_fallthru
        _
    $region28: #{tpu_custom_call.1} parent=5 // pred_fallthru
      _
    %p368 = scmp.le.s32.totalorder 2, %s23
    // Predicated region
    $region41: #{tpu_custom_call.1} parent=5 // pred_check
      %p369 = pneg %p368
    $region42: #{tpu_custom_call.1} parent=5 // pred_check_branch
      %371 = sbr.rel (%p369) target = $region44
    $region43: #{tpu_custom_call.1} parent=5 // pred_region
      %s372 = ssub.s32 %s23, 2
      // Predicated region
      $region45: #{tpu_custom_call.1} parent=43 // pred_check
        %p373 = pneg %p127
      $region46: #{tpu_custom_call.1} parent=43 // pred_check_branch
        %375 = sbr.rel (%p373) target = $region48
      $region47: #{tpu_custom_call.1} parent=43 // pred_region
        %s376 = sld [smem:[#allocation4 + %s34]]
        %s377 = smul.u32 %s376, %s35
        %s378 = sld [smem:[#allocation3 + %s34]]
        %s379 = smul.u32 8, %s377
        %p380 = scmp.lt.s32.totalorder %s378, 1
        %s381 = scalar_select %p380, %s378, 1
        %p382 = scmp.lt.s32.totalorder %s379, 7
        %s383 = scalar_select %p382, %s379, 7
        %s384 = smul.addr %s381, 8
        %s385 = sadd.s32 %s383, %s384
        %s386 = smul.addr %s385, 8
        %s387 = scalar_lea.vmem %s4, %s386
      $region48: #{tpu_custom_call.1} parent=43 // pred_fallthru
        _
    $region44: #{tpu_custom_call.1} parent=5 // pred_fallthru
      _
  $region6: #{tpu_custom_call.1} parent=0 // loop_footer
    %s27 = sadd.s32 1, %s23
  $region7: #{tpu_custom_call.1} parent=0 // loop_footer_branch
    %22 = sbr.rel target = $region3
  $region8: #{tpu_custom_call.1} parent=0 // loop_exit
    _

</llo_original>
